<compile_context>
chip_gen: v6e
topology: v6e:2x2x1
jax: 0.10.0
libtpu: 0.0.40
codegen_flags: <defaults>
</compile_context>

<pallas_src>
import functools

import jax
import jax.numpy as jnp
from jax.experimental import pallas as pl
from jax.experimental.pallas import tpu as pltpu


def _round_up(a, b):
    return (a + b - 1) // b * b


def _attention_kernel(x_ref, m_ref, o_ref, acc_ref, *, inv_hw, c_sig, c_total):
    """grid = (num_batch_blocks, num_spatial_tiles).

    x_ref   : (B_blk, C_in, TS)     tile of the zero-padded (N_pad, C_in, HW_pad) input
    m_ref   : (C_in, C_pad) f32     fused weights [T | T@Wout^T | T@Wk^T | 0-pad]
    o_ref   : (B_blk, 1, C_pad)     fused activations [sigmoid | sigmoid | softmax | 0]
    acc_ref : (B_blk, C_in) f32     running per-channel spatial sum (VMEM scratch)
    """
    t = pl.program_id(1)

    @pl.when(t == 0)
    def _():
        acc_ref[...] = jnp.zeros_like(acc_ref)

    # Partial global-average-pool: per-channel sums over this spatial tile
    # (lane-axis reduction, accumulated in f32).  Zero-padded tail columns
    # contribute nothing; we divide by the true H*W below.
    xb = x_ref[...].astype(jnp.float32)                # (B_blk, C_in, TS)
    acc_ref[...] += jnp.sum(xb, axis=-1)               # (B_blk, C_in)

    @pl.when(t == pl.num_programs(1) - 1)
    def _():
        p = acc_ref[...] * inv_hw                      # (B_blk, C_in) global mean
        # One fused matmul: [conv1d(p) | Wout conv1d(p) | Wk conv1d(p) | pad]
        y = jnp.dot(p, m_ref[...],
                    preferred_element_type=jnp.float32)  # (B_blk, C_pad)

        col = jax.lax.broadcasted_iota(jnp.int32, y.shape, 1)
        is_k = jnp.logical_and(col >= c_sig, col < c_total)   # softmax segment
        # segment softmax over the K_num columns (max-subtracted)
        m = jnp.max(jnp.where(is_k, y, -jnp.inf), axis=-1, keepdims=True)
        e = jnp.where(is_k, jnp.exp(y - m), 0.0)
        soft = e / jnp.sum(e, axis=-1, keepdims=True)
        # sigmoid on the first C_in + C_out columns, softmax on the K_num
        # columns, zeros on the lane padding.
        res = jnp.where(is_k, soft, jax.nn.sigmoid(y))
        res = jnp.where(col < c_total, res, 0.0)
        o_ref[:, 0, :] = res.astype(o_ref.dtype)


def attention_forward(x, w_conv1d, w_out, w_k, *,
                      x_tile_budget_bytes=4 * 1024 * 1024):
    """Pallas equivalent of SOLNet Attention.forward.

    x        : (N, C_in, H, W)      NCHW input (PyTorch layout)
    w_conv1d : (1, 1, 3)            Conv1d(1, 1, 3, padding=1, bias=False).weight
    w_out    : (C_out, C_in, 1, 1)  out_channel_conv2d.weight
    w_k      : (K_num, C_in, 1, 1)  kernel_conv2d.weight
    returns  : (x_inchannel (N,C_in,1,1),
                x_outchannel (N,C_out,1,1),
                x_kernel (N,K_num,1,1,1,1))
    """
    N, C_in, H, W = x.shape
    C_out = w_out.shape[0]
    K_num = w_k.shape[0]
    assert w_out.shape[1] == C_in and w_k.shape[1] == C_in
    assert w_conv1d.shape == (1, 1, 3)
    HW = H * W
    itemsize = jnp.dtype(x.dtype).itemsize

    # ---- fold conv1d(k=3, pad=1) into a band matrix T and fuse all branches
    # into one lane-padded weight matrix  M = [T | T@Wout^T | T@Wk^T | 0-pad]
    w3 = w_conv1d.reshape(3).astype(jnp.float32)
    T = (w3[0] * jnp.eye(C_in, k=1, dtype=jnp.float32)
         + w3[1] * jnp.eye(C_in, k=0, dtype=jnp.float32)
         + w3[2] * jnp.eye(C_in, k=-1, dtype=jnp.float32))          # y = p @ T
    m_out = T @ w_out.reshape(C_out, C_in).astype(jnp.float32).T    # (C_in, C_out)
    m_k = T @ w_k.reshape(K_num, C_in).astype(jnp.float32).T        # (C_in, K_num)
    C_total = C_in + C_out + K_num
    C_pad = _round_up(C_total, 128)
    M = jnp.zeros((C_in, C_pad), jnp.float32)
    M = M.at[:, :C_in].set(T)
    M = M.at[:, C_in:C_in + C_out].set(m_out)
    M = M.at[:, C_in + C_out:C_total].set(m_k)

    # ---- tile / grid selection, budgeted against VMEM ----------------------
    HW_128 = _round_up(HW, 128)
    img_bytes = C_in * HW_128 * itemsize
    if img_bytes <= x_tile_budget_bytes:
        # Small images: whole (padded) image per tile, block batches per step.
        spatial_tile = HW_128
        B_blk = max(1, min(N, x_tile_budget_bytes // img_bytes))
    else:
        # Large images: one image per step, lane-dense 128-multiple tiles.
        B_blk = 1
        spatial_tile = max(128, (x_tile_budget_bytes // (C_in * itemsize))
                           // 128 * 128)
        spatial_tile = min(spatial_tile, HW_128)
    HW_pad = _round_up(HW, spatial_tile)
    n_tiles = HW_pad // spatial_tile
    N_pad = _round_up(N, B_blk)

    x_flat = x.reshape(N, C_in, HW)            # free reshape, no HBM relayout
    if HW_pad != HW or N_pad != N:
        # zero padding: spatial zeros don't change the sum (we divide by the
        # true HW); padded batch rows are sliced away below.
        x_flat = jnp.pad(x_flat, ((0, N_pad - N), (0, 0), (0, HW_pad - HW)))

    kernel = functools.partial(_attention_kernel,
                               inv_hw=1.0 / float(HW),
                               c_sig=C_in + C_out,
                               c_total=C_total)

    out = pl.pallas_call(
        kernel,
        out_shape=jax.ShapeDtypeStruct((N_pad, 1, C_pad), x.dtype),
        grid_spec=pltpu.PrefetchScalarGridSpec(
            num_scalar_prefetch=0,
            grid=(N_pad // B_blk, n_tiles),
            in_specs=[
                pl.BlockSpec((B_blk, C_in, spatial_tile),
                             lambda n, t: (n, 0, t)),
                pl.BlockSpec((C_in, C_pad), lambda n, t: (0, 0)),
            ],
            out_specs=pl.BlockSpec((B_blk, 1, C_pad), lambda n, t: (n, 0, 0)),
            scratch_shapes=[pltpu.VMEM((B_blk, C_in), jnp.float32)],
        ),
        compiler_params=pltpu.CompilerParams(
            dimension_semantics=("parallel", "arbitrary"),
            vmem_limit_bytes=48 * 1024 * 1024),
    )(x_flat, M)

    out2 = out[:N, 0, :]
    x_inchannel = out2[:, :C_in].reshape(N, C_in, 1, 1)
    x_outchannel = out2[:, C_in:C_in + C_out].reshape(N, C_out, 1, 1)
    x_kernel = out2[:, C_in + C_out:C_total].reshape(N, K_num, 1, 1, 1, 1)
    return x_inchannel, x_outchannel, x_kernel


def _reference(x, w_conv1d, w_out, w_k):
    """Pure-JAX reference matching the PyTorch forward, for verification."""
    N, C_in, H, W = x.shape
    C_out = w_out.shape[0]
    K_num = w_k.shape[0]
    p = jnp.mean(x, axis=(2, 3))                              # adaptive avg pool
    w3 = w_conv1d.reshape(3)
    pp = jnp.pad(p, ((0, 0), (1, 1)))
    y = w3[0] * pp[:, :-2] + w3[1] * pp[:, 1:-1] + w3[2] * pp[:, 2:]
    x_in = jax.nn.sigmoid(y).reshape(N, C_in, 1, 1)
    x_out = jax.nn.sigmoid(y @ w_out.reshape(C_out, C_in).T).reshape(N, C_out, 1, 1)
    x_k = jax.nn.softmax(y @ w_k.reshape(K_num, C_in).T, axis=-1)
    return x_in, x_out, x_k.reshape(N, K_num, 1, 1, 1, 1)


if __name__ == "__main__":
    key = jax.random.PRNGKey(0)
    k_x1, k_x2, k_c1, k_o, k_k = jax.random.split(key, 5)

    # Shapes consistent with Attention(in_planes=16, out_planes=32,
    # kernel_size=3, kernel_num=4).
    C_in, C_out, K_num = 16, 32, 4
    w_conv1d = jax.random.normal(k_c1, (1, 1, 3), jnp.float32) * 0.5
    w_out = jax.random.normal(k_o, (C_out, C_in, 1, 1), jnp.float32) * 0.3
    w_k = jax.random.normal(k_k, (K_num, C_in, 1, 1), jnp.float32) * 0.3

    # Case 1: HW = 256 (128-multiple) -> single-tile, batch-blocked fast path
    # (grid (1, 1), B_blk = 2).
    x1 = jax.random.normal(k_x1, (2, C_in, 16, 16), jnp.float32)
    outs1 = jax.block_until_ready(attention_forward(x1, w_conv1d, w_out, w_k))
    refs1 = _reference(x1, w_conv1d, w_out, w_k)
    for a, b in zip(outs1, refs1):
        assert a.shape == b.shape
        assert jnp.allclose(a, b, atol=1e-4, rtol=1e-4), "case 1 mismatch"

    # Case 2: HW = 196 (not a 128-multiple) with a tiny tile budget -> exercises
    # the zero-padded spatial tail and the multi-tile accumulate/finalize path
    # (grid (3, 2), tile = 128).
    x2 = jax.random.normal(k_x2, (3, C_in, 14, 14), jnp.float32)
    outs2 = jax.block_until_ready(
        attention_forward(x2, w_conv1d, w_out, w_k,
                          x_tile_budget_bytes=8 * 1024))
    refs2 = _reference(x2, w_conv1d, w_out, w_k)
    for a, b in zip(outs2, refs2):
        assert a.shape == b.shape
        assert jnp.allclose(a, b, atol=1e-4, rtol=1e-4), "case 2 mismatch"

    assert outs1[0].shape == (2, C_in, 1, 1)
    assert outs1[1].shape == (2, C_out, 1, 1)
    assert outs1[2].shape == (2, K_num, 1, 1, 1, 1)

    print("KERNEL_OK")
</pallas_src>

<mosaic_0001>
module attributes {stable_mosaic.version = 11 : i64} {
  func.func @_attention_kernel(%arg0: i32, %arg1: i32, %arg2: memref<2x16x256xf32, #tpu.memory_space<vmem>>, %arg3: memref<16x128xf32, #tpu.memory_space<vmem>>, %arg4: memref<2x1x128xf32, #tpu.memory_space<vmem>>, %arg5: memref<2x16xf32, #tpu.memory_space<vmem>>) attributes {dimension_semantics = [#tpu.dimension_semantics<parallel>, #tpu.dimension_semantics<arbitrary>], iteration_bounds = array<i64: 1, 1>, scalar_prefetch = 0 : i64, scratch_operands = 1 : i64, tpu.core_type = #tpu.core_type<tc>, window_params = [{transform_indices = @transform_0, window_bounds = array<i64: 2, 16, 256>}, {pipeline_mode = #tpu.pipeline_mode<synchronous>, transform_indices = @transform_1, window_bounds = array<i64: 16, 128>}, {transform_indices = @transform_2, window_bounds = array<i64: 2, 1, 128>}]} {
    %c0_i32 = arith.constant 0 : i32
    %0 = arith.cmpi eq, %arg1, %c0_i32 : i32
    %1 = arith.extui %0 : i1 to i32
    %c0_i32_0 = arith.constant 0 : i32
    %2 = arith.cmpi ne, %1, %c0_i32_0 : i32
    scf.if %2 {
      %cst_9 = arith.constant 0.000000e+00 : f32
      %11 = vector.broadcast %cst_9 : f32 to vector<2x16xf32>
      %c0_10 = arith.constant 0 : index
      %c0_11 = arith.constant 0 : index
      %12 = vector.load %arg5[%c0_10, %c0_11] : memref<2x16xf32, #tpu.memory_space<vmem>>, vector<2x16xf32>
      tpu.vector_store %arg5[%c0_10, %c0_11], %11 {strides = array<i32>} : memref<2x16xf32, #tpu.memory_space<vmem>>, vector<2x16xf32>,
    } else {
    }
    %c0 = arith.constant 0 : index
    %c0_1 = arith.constant 0 : index
    %c0_2 = arith.constant 0 : index
    %3 = vector.load %arg2[%c0, %c0_1, %c0_2] : memref<2x16x256xf32, #tpu.memory_space<vmem>>, vector<2x16x256xf32>
    %c0_3 = arith.constant 0 : index
    %c0_4 = arith.constant 0 : index
    %4 = vector.load %arg5[%c0_3, %c0_4] : memref<2x16xf32, #tpu.memory_space<vmem>>, vector<2x16xf32>
    %cst = arith.constant dense<0.000000e+00> : vector<2x16xf32>
    %5 = vector.multi_reduction <add>, %3, %cst [2] : vector<2x16x256xf32> to vector<2x16xf32>
    %6 = arith.addf %4, %5 : vector<2x16xf32>
    %c0_5 = arith.constant 0 : index
    %c0_6 = arith.constant 0 : index
    %7 = vector.load %arg5[%c0_5, %c0_6] : memref<2x16xf32, #tpu.memory_space<vmem>>, vector<2x16xf32>
    tpu.vector_store %arg5[%c0_5, %c0_6], %6 {strides = array<i32>} : memref<2x16xf32, #tpu.memory_space<vmem>>, vector<2x16xf32>,
    %c0_i32_7 = arith.constant 0 : i32
    %8 = arith.cmpi eq, %arg1, %c0_i32_7 : i32
    %9 = arith.extui %8 : i1 to i32
    %c0_i32_8 = arith.constant 0 : i32
    %10 = arith.cmpi ne, %9, %c0_i32_8 : i32
    scf.if %10 {
      %c0_9 = arith.constant 0 : index
      %c0_10 = arith.constant 0 : index
      %11 = vector.load %arg5[%c0_9, %c0_10] : memref<2x16xf32, #tpu.memory_space<vmem>>, vector<2x16xf32>
      %cst_11 = arith.constant 3.906250e-03 : f32
      %12 = vector.broadcast %cst_11 : f32 to vector<2x16xf32>
      %13 = arith.mulf %11, %12 : vector<2x16xf32>
      %c0_12 = arith.constant 0 : index
      %c0_13 = arith.constant 0 : index
      %14 = vector.load %arg3[%c0_12, %c0_13] : memref<16x128xf32, #tpu.memory_space<vmem>>, vector<16x128xf32>
      %cst_14 = arith.constant dense<0.000000e+00> : vector<2x128xf32>
      %15 = tpu.matmul %13, %14, %cst_14 {dimension_numbers = #tpu.dot_dimension_numbers<[1], [0], [0], [1], [0, 0, 1, 1], [], []>} : vector<2x16xf32>, vector<16x128xf32>, vector<2x128xf32> -> vector<2x128xf32>
      %16 = tpu.iota {dimensions = array<i32: 1>} : vector<2x128xi32>
      %c48_i32 = arith.constant 48 : i32
      %17 = vector.broadcast %c48_i32 : i32 to vector<2x128xi32>
      %18 = arith.cmpi sge, %16, %17 : vector<2x128xi32>
      %c52_i32 = arith.constant 52 : i32
      %19 = vector.broadcast %c52_i32 : i32 to vector<2x128xi32>
      %20 = arith.cmpi slt, %16, %19 : vector<2x128xi32>
      %21 = arith.andi %18, %20 : vector<2x128xi1>
      %cst_15 = arith.constant 0xFF800000 : f32
      %22 = vector.broadcast %cst_15 : f32 to vector<2x128xf32>
      %23 = arith.select %21, %15, %22 : vector<2x128xi1>, vector<2x128xf32>
      %cst_16 = arith.constant dense<0xFF800000> : vector<2xf32>
      %24 = vector.multi_reduction <maximumf>, %23, %cst_16 [1] : vector<2x128xf32> to vector<2xf32>
      %25 = vector.shape_cast %24 : vector<2xf32> to vector<2x1xf32>
      %26 = vector.broadcast %25 : vector<2x1xf32> to vector<2x128xf32>
      %27 = arith.subf %15, %26 : vector<2x128xf32>
      %28 = math.exp %27 : vector<2x128xf32>
      %cst_17 = arith.constant 0.000000e+00 : f32
      %29 = vector.broadcast %cst_17 : f32 to vector<2x128xf32>
      %30 = arith.select %21, %28, %29 : vector<2x128xi1>, vector<2x128xf32>
      %cst_18 = arith.constant dense<0.000000e+00> : vector<2xf32>
      %31 = vector.multi_reduction <add>, %30, %cst_18 [1] : vector<2x128xf32> to vector<2xf32>
      %32 = vector.shape_cast %31 : vector<2xf32> to vector<2x1xf32>
      %33 = vector.broadcast %32 : vector<2x1xf32> to vector<2x128xf32>
      %34 = arith.divf %30, %33 : vector<2x128xf32>
      %35 = arith.negf %15 : vector<2x128xf32>
      %36 = math.exp %35 : vector<2x128xf32>
      %cst_19 = arith.constant 1.000000e+00 : f32
      %37 = vector.broadcast %cst_19 : f32 to vector<2x128xf32>
      %38 = arith.addf %37, %36 : vector<2x128xf32>
      %39 = arith.divf %37, %38 : vector<2x128xf32>
      %40 = arith.select %21, %34, %39 : vector<2x128xi1>, vector<2x128xf32>
      %c52_i32_20 = arith.constant 52 : i32
      %41 = vector.broadcast %c52_i32_20 : i32 to vector<2x128xi32>
      %42 = arith.cmpi slt, %16, %41 : vector<2x128xi32>
      %cst_21 = arith.constant 0.000000e+00 : f32
      %43 = vector.broadcast %cst_21 : f32 to vector<2x128xf32>
      %44 = arith.select %42, %40, %43 : vector<2x128xi1>, vector<2x128xf32>
      %c0_22 = arith.constant 0 : index
      %c0_23 = arith.constant 0 : index
      %c0_24 = arith.constant 0 : index
      %45 = vector.load %arg4[%c0_22, %c0_23, %c0_24] : memref<2x1x128xf32, #tpu.memory_space<vmem>>, vector<2x1x128xf32>
      %46 = vector.shape_cast %45 : vector<2x1x128xf32> to vector<2x128xf32>
      %47 = vector.shape_cast %44 : vector<2x128xf32> to vector<2x1x128xf32>
      tpu.vector_store %arg4[%c0_22, %c0_23, %c0_24], %47 {strides = array<i32>} : memref<2x1x128xf32, #tpu.memory_space<vmem>>, vector<2x1x128xf32>,
    } else {
    }
    return
  }
  func.func @transform_0(%arg0: i32, %arg1: i32) -> (i32, i32, i32) {
    %c0_i32 = arith.constant 0 : i32
    %c0_i32_0 = arith.constant 0 : i32
    return %arg0, %c0_i32, %arg1 : i32, i32, i32
  }
  func.func @transform_1(%arg0: i32, %arg1: i32) -> (i32, i32) {
    %c0_i32 = arith.constant 0 : i32
    %c0_i32_0 = arith.constant 0 : i32
    %c0_i32_1 = arith.constant 0 : i32
    return %c0_i32, %c0_i32_0 : i32, i32
  }
  func.func @transform_2(%arg0: i32, %arg1: i32) -> (i32, i32, i32) {
    %c0_i32 = arith.constant 0 : i32
    %c0_i32_0 = arith.constant 0 : i32
    %c0_i32_1 = arith.constant 0 : i32
    return %arg0, %c0_i32, %c0_i32_0 : i32, i32, i32
  }
}

</mosaic_0001>

<llo_original>
// kernel: tpu_custom_call.1
$region0: #{tpu_custom_call.1}
  #allocation0 [shape = 'u32[]', space=smem, size = 0x4, offset = 0x4, fixed_abs, tag = 'smem constant byte address 0x4 - core index']
  #allocation1 [shape = 'u32[144,128]{1,0:T(1,128)}', space=vmem, size = 0x12000, scoped, tag = 'internal scratch']
  #allocation2 [shape = 'f32[2,16]{1,0:T(2,128)}', space=vmem, size = 0x400, scoped, tag = 'scratch operand']
  %s0 = inlined_call_operand.hbm [shape: f32[2,16,256], index: 0, kind: input, shape index: {}]
  %s1 = inlined_call_operand.hbm [shape: f32[16,128], index: 1, kind: input, shape index: {}]
  %s2 = inlined_call_operand.hbm [shape: f32[2,1,128], index: 2, kind: output, shape index: {}]
  %s3 = sld [smem:[#allocation0]]
  $region34: #{tpu_custom_call.1} parent=0
    _
  %s5 = ssub.s32 1, %s3
  %s6 = scalar_select 0, %s5, %s3
  $region1: #{tpu_custom_call.1} parent=0
    #allocation3 [shape = 'u8[32768]{0}', space=vmem, size = 0x8000, scoped, tag = 'input window, operand 0, single buffered']
    #allocation4 [shape = 's32[1]{0}', space=sflag, size = 0x4, scoped, tag = 'scoped memory for tpu_custom_call.1']
    #allocation5 [shape = 's32[1]{0}', space=sflag, size = 0x4, scoped, tag = 'scoped memory for tpu_custom_call.1']
    #allocation6 [shape = 'u8[8192]{0}', space=vmem, size = 0x2000, scoped, tag = 'input window, operand 1, single buffered']
    #allocation7 [shape = 's32[1]{0}', space=sflag, size = 0x4, scoped, tag = 'scoped memory for tpu_custom_call.1']
    #allocation8 [shape = 'u8[1024]{0}', space=vmem, size = 0x400, scoped, tag = 'output window, operand 0, single buffered']
    %7 = vsyncpa [#allocation4], 0
    %8 = vsyncpa [#allocation7], 0
    %9 = vsyncpa [#allocation5], 0
    // Predicated region
    $region2: #{tpu_custom_call.1} parent=1 // pred_check
      _
    $region3: #{tpu_custom_call.1} parent=1 // pred_check_branch
      %11 = sbr.rel (0) target = $region5
    $region4: #{tpu_custom_call.1} parent=1 // pred_region
      %s13 = ssub.s32 1024, 1024
      %14 = vsyncadd [#allocation4], %s13
      %s15 = sshll.u32 [#allocation3], 4
      %s16 = int_to_ptr.vmem [resolvable:$true] %s15
      %21 = dma.hbm_to_vmem [thread:$0]  %s0, 1024, %s16, [#allocation4], 256, 256, 16
    $region5: #{tpu_custom_call.1} parent=1 // pred_fallthru
      _
    // Predicated region
    $region6: #{tpu_custom_call.1} parent=1 // pred_check
      _
    $region7: #{tpu_custom_call.1} parent=1 // pred_check_branch
      %23 = sbr.rel (0) target = $region9
    $region8: #{tpu_custom_call.1} parent=1 // pred_region
      %s25 = ssub.s32 256, 256
      %26 = vsyncadd [#allocation7], %s25
      %s27 = sshll.u32 [#allocation6], 4
      %s28 = int_to_ptr.vmem [resolvable:$true] %s27
      %33 = dma.hbm_to_vmem [thread:$0]  %s1, 256, %s28, [#allocation7], 128, 128, 8
    $region9: #{tpu_custom_call.1} parent=1 // pred_fallthru
      _
    // Predicated region
    $region10: #{tpu_custom_call.1} parent=1 // pred_check
      _
    $region11: #{tpu_custom_call.1} parent=1 // pred_check_branch
      %35 = sbr.rel (0) target = $region13
    $region12: #{tpu_custom_call.1} parent=1 // pred_region
      %36 = dma.done [#allocation4], 1024
    $region13: #{tpu_custom_call.1} parent=1 // pred_fallthru
      _
    // Predicated region
    $region14: #{tpu_custom_call.1} parent=1 // pred_check
      _
    $region15: #{tpu_custom_call.1} parent=1 // pred_check_branch
      %38 = sbr.rel (0) target = $region17
    $region16: #{tpu_custom_call.1} parent=1 // pred_region
      %39 = dma.done [#allocation7], 256
    $region17: #{tpu_custom_call.1} parent=1 // pred_fallthru
      _
    %p40 = scmp.eq.s32.totalorder 0, 0
    // Predicated region
    $region18: #{tpu_custom_call.1} parent=1 // pred_check
      %p41 = pneg %p40
    $region19: #{tpu_custom_call.1} parent=1 // pred_check_branch
      %43 = sbr.rel (%p41) target = $region21
    $region20: #{tpu_custom_call.1} parent=1 // pred_region
      %vm44 = vcmask 123904
      %45 = vst.msk [vmem:[#allocation2] sm:$0x3] %vm44, 0.0
    $region21: #{tpu_custom_call.1} parent=1 // pred_fallthru
      _
    %v46 = vld [vmem:[#allocation3] sm:$0xff]
    %v47 = vld [vmem:[#allocation3 + $0x8] sm:$0xff]
    %v48 = vld [vmem:[#allocation3 + $0x10] sm:$0xff]
    %v49 = vld [vmem:[#allocation3 + $0x18] sm:$0xff]
    %v50 = vld [vmem:[#allocation3 + $0x20] sm:$0xff]
    %v51 = vld [vmem:[#allocation3 + $0x28] sm:$0xff]
    %v52 = vld [vmem:[#allocation3 + $0x30] sm:$0xff]
    %v53 = vld [vmem:[#allocation3 + $0x38] sm:$0xff]
    %v54 = vld [vmem:[#allocation2] sm:$0x3]
    %v55 = vadd.f32 %v46, %v47
    %56 = vadd.xlane.f32.xlu0 %v55
    %v57 = vpop.xlane.xlu0 %56
    %v58 = vadd.f32 %v48, %v49
    %59 = vadd.xlane.f32.xlu0 %v58
    %v60 = vpop.xlane.xlu0 %59
    %v61 = vadd.f32 %v50, %v51
    %62 = vadd.xlane.f32.xlu0 %v61
    %v63 = vpop.xlane.xlu0 %62
    %v64 = vadd.f32 %v52, %v53
    %65 = vadd.xlane.f32.xlu0 %v64
    %v66 = vpop.xlane.xlu0 %65
    %v71 = vlaneseq
    %v72 = vand.u32 %v71, 127
    %v73 = vlaneseq
    %v74 = vshrl.u32 %v73, 7
    %v75 = vsub.s32 %v72, %v74
    %v76 = vrot.slane %v57, %v75
    %v77 = vadd.s32 %v72, 4294967288
    %v78 = vlaneseq
    %v79 = vshrl.u32 %v78, 7
    %v80 = vsub.s32 %v77, %v79
    %v81 = vrot.slane %v60, %v80
    %vm82 = vcmask 130112
    %v83 = vsel %vm82, %v81, %v76
    %v84 = vlaneseq
    %v85 = vshrl.u32 %v84, 7
    %v86 = vsub.s32 %v72, %v85
    %v87 = vrot.slane %v63, %v86
    %v88 = vlaneseq
    %v89 = vshrl.u32 %v88, 7
    %v90 = vsub.s32 %v77, %v89
    %v91 = vrot.slane %v66, %v90
    %v92 = vsel %vm82, %v91, %v87
    %vm93 = vcmask 1041409
    %v94 = vsel %vm93, %v92, %v83
    %v96 = vadd.f32 %v54, %v94
    %vm97 = vcmask 123904
    %98 = vst.msk [vmem:[#allocation2] sm:$0x3] %vm97, %v96
    // Predicated region
    $region22: #{tpu_custom_call.1} parent=1 // pred_check
      %p99 = pneg %p40
    $region23: #{tpu_custom_call.1} parent=1 // pred_check_branch
      %101 = sbr.rel (%p99) target = $region25
    $region24: #{tpu_custom_call.1} parent=1 // pred_region
      %v102 = vld [vmem:[#allocation2] sm:$0x3]
      %v103 = vmul.f32 %v102, 0.00390625
      %v104 = vld [vmem:[#allocation6] sm:$0xff]
      %v105 = vld [vmem:[#allocation6 + $0x8] sm:$0xff]
      %vm106 = vcmask 130048
      %v108 = vsel %vm106, %v103, 0
      %110 = vmatprep.subr.mxu0 0.0
      %111 = vmatpush1.msra.mxu0 0.0
      %112 = vmatprep.subr.mxu0 0.0
      %113 = vmatpush1.msra.mxu0 0.0
      %114 = vmatprep.subr.mxu0 0.0
      %115 = vmatpush1.msra.mxu0 0.0
      %116 = vmatprep.subr.mxu0 0.0
      %117 = vmatpush1.msra.mxu0 0.0
      %118 = vmatprep.subr.mxu0 0.0
      %119 = vmatpush1.msra.mxu0 0.0
      %120 = vmatprep.subr.mxu0 0.0
      %121 = vmatpush1.msra.mxu0 0.0
      %122 = vmatprep.subr.mxu0 0.0
      %123 = vmatpush1.msra.mxu0 0.0
      %124 = vmatprep.subr.mxu0 0.0
      %125 = vmatpush1.msra.mxu0 0.0
      %126 = vmatprep.subr.mxu0 0.0
      %127 = vmatpush1.msra.mxu0 0.0
      %128 = vmatprep.subr.mxu0 0.0
      %129 = vmatpush1.msra.mxu0 0.0
      %130 = vmatprep.subr.mxu0 0.0
      %131 = vmatpush1.msra.mxu0 0.0
      %132 = vmatprep.subr.mxu0 0.0
      %133 = vmatpush1.msra.mxu0 0.0
      %134 = vmatprep.subr.mxu0 0.0
      %135 = vmatpush1.msra.mxu0 0.0
      %136 = vmatprep.subr.mxu0 0.0
      %137 = vmatpush1.msra.mxu0 0.0
      %138 = vmatprep.subr.mxu0 0.0
      %139 = vmatpush1.msra.mxu0 %v105
      %140 = vmatprep.subr.mxu0 0.0
      %141 = vmatpush1.msra.mxu0 %v104
      %142 = vmatprep.subr.mxu0 0.0
      %143 = vmatpush2.msra.mxu0 0.0
      %144 = vmatprep.subr.mxu0 0.0
      %145 = vmatpush2.msra.mxu0 0.0
      %146 = vmatprep.subr.mxu0 0.0
      %147 = vmatpush2.msra.mxu0 0.0
      %148 = vmatprep.subr.mxu0 0.0
      %149 = vmatpush2.msra.mxu0 0.0
      %150 = vmatprep.subr.mxu0 0.0
      %151 = vmatpush2.msra.mxu0 0.0
      %152 = vmatprep.subr.mxu0 0.0
      %153 = vmatpush2.msra.mxu0 0.0
      %154 = vmatprep.subr.mxu0 0.0
      %155 = vmatpush2.msra.mxu0 0.0
      %156 = vmatprep.subr.mxu0 0.0
      %157 = vmatpush2.msra.mxu0 0.0
      %158 = vmatprep.subr.mxu0 0.0
      %159 = vmatpush2.msra.mxu0 0.0
      %160 = vmatprep.subr.mxu0 0.0
      %161 = vmatpush2.msra.mxu0 0.0
      %162 = vmatprep.subr.mxu0 0.0
      %163 = vmatpush2.msra.mxu0 0.0
      %164 = vmatprep.subr.mxu0 0.0
      %165 = vmatpush2.msra.mxu0 0.0
      %166 = vmatprep.subr.mxu0 0.0
      %167 = vmatpush2.msra.mxu0 0.0
      %168 = vmatprep.subr.mxu0 0.0
      %169 = vmatpush2.msra.mxu0 0.0
      %170 = vmatprep.subr.mxu0 0.0
      %171 = vmatpush2.msra.mxu0 0.0
      %172 = vmatprep.subr.mxu0 0.0
      %173 = vmatpush2.msra.mxu0 0.0
      %174 = vmatprep.mubr.f32.mxu0 0.0
      %175 = vmatmul.mubr.f32.gmra.mxu0 %v108
      %v176 = vpop.f32.mrf.mxu0
      %v177 = vadd.f32 0.0, %v176
      %v178 = vpop.f32.mrf.mxu0
      %179 = vdwg.mxu0
      %vm180 = vcmp.ge.s32.totalorder %v72, 48
      %vm181 = vcmp.lt.s32.totalorder %v72, 52
      %vm182 = vmand %vm180, %vm181
      %v183 = vsel %vm182, %v177, -inf
      %vm184 = vcmask 1041408
      %v185 = vsel %vm184, %v183, -inf
      %186 = vmax.xlane.f32.xlu0 %v185
      %v187 = vpop.xlane.xlu0 %186
      %v188 = vsub.f32 %v177, %v187
      %v189 = vmul.f32 %v188, 1.442695
      %v190 = vpow.pop %v189
      %v191 = vsel %vm182, %v190, 0.0
      %v192 = vsel %vm184, %v191, 0.0
      %193 = vadd.xlane.f32.xlu0 %v192
      %v194 = vpop.xlane.xlu0 %193
      %v195 = vrcp.pop %v194
      %v196 = vmul.f32 %v191, %v195
      %v197 = vxor.u32 %v177, 2147483648
      %v198 = vmul.f32 %v197, 1.442695
      %v199 = vpow.pop %v198
      %v200 = vadd.f32 %v199, 1.0
      %v201 = vrcp.pop %v200
      %v202 = vmul.f32 1.0, %v201
      %v203 = vsel %vm182, %v196, %v202
      %v204 = vsel %vm181, %v203, 0.0
      %v207 = vunpack.c.l.s4 1966171168
      %v208 = vunpack.c.0.s8 %v207
      %v209 = vlaneseq
      %v210 = vshrl.u32 %v209, 7
      %v211 = vsub.s32 %v208, %v210
      %v212 = vrot.slane %v204, %v211
      %v213 = vcombine.high %v212, %v212
      %v215 = vunpack.c.l.s4 1966171168
      %v216 = vunpack.c.0.s8 %v215
      %v217 = vlaneseq
      %v218 = vshrl.u32 %v217, 7
      %v219 = vsub.s32 %v216, %v218
      %v220 = vrot.slane %v212, %v219
      %v222 = vunpack.c.l.s4 1966171168
      %v223 = vunpack.c.0.s8 %v222
      %v224 = vlaneseq
      %v225 = vshrl.u32 %v224, 7
      %v226 = vsub.s32 %v223, %v225
      %v227 = vrot.slane %v213, %v226
      %230 = vst [vmem:[#allocation8] sm:$0x1] %v220
      %231 = vst [vmem:[#allocation8 + $0x1] sm:$0x1] %v227
    $region25: #{tpu_custom_call.1} parent=1 // pred_fallthru
      _
    // Predicated region
    $region26: #{tpu_custom_call.1} parent=1 // pred_check
      _
    $region27: #{tpu_custom_call.1} parent=1 // pred_check_branch
      %233 = sbr.rel (0) target = $region29
    $region28: #{tpu_custom_call.1} parent=1 // pred_region
      %s235 = ssub.s32 32, 32
      %236 = vsyncadd [#allocation5], %s235
      %s237 = sshll.u32 [#allocation8], 4
      %s238 = int_to_ptr.vmem [resolvable:$true] %s237
      %243 = dma.vmem_to_hbm [thread:$0]  %s238, 32, %s2, [#allocation5], 16, 16, 1
    $region29: #{tpu_custom_call.1} parent=1 // pred_fallthru
      _
    // Predicated region
    $region30: #{tpu_custom_call.1} parent=1 // pred_check
      _
    $region31: #{tpu_custom_call.1} parent=1 // pred_check_branch
      %245 = sbr.rel (0) target = $region33
    $region32: #{tpu_custom_call.1} parent=1 // pred_region
      %246 = dma.done [#allocation5], 32
    $region33: #{tpu_custom_call.1} parent=1 // pred_fallthru
      _
    %247 = vsyncpa [#allocation4], 1
    %248 = vsyncpa [#allocation7], 1
    %249 = vsyncpa [#allocation5], 1

</llo_original>
